<compile_context>
chip_gen: v6e
topology: v6e:2x2x1
jax: 0.10.0
libtpu: 0.0.40
codegen_flags: <defaults>
</compile_context>

<pallas_src>
import math

import jax
import jax.numpy as jnp
from jax.experimental import pallas as pl
from jax.experimental.pallas import tpu as pltpu

_VMEM_LIMIT_BYTES = 32 * 1024 * 1024        # safe on v5e/v6e/v7x
_BLOCK_BYTES_TARGET = 2 * 1024 * 1024       # per-input block; ~6x double-buffered


def _sigmoid(g):
    # sigmoid(x) == 0.5 * (1 + tanh(0.5 * x)) : single EUP push (no exp + divide).
    return 0.5 * (jnp.tanh(g * 0.5) + 1.0)


def _glu_split_kernel(out_ref, gate_ref, o_ref):
    # Halves arrive as separate, aligned tiles -> pure VPU/EUP elementwise body.
    o_ref[...] = (out_ref[...] * _sigmoid(gate_ref[...])).astype(o_ref.dtype)


def _glu_fused_kernel(x_ref, o_ref):
    # Fallback for small / non-128-aligned C on the lane axis.
    x = x_ref[...]
    c = x.shape[-1] // 2
    o_ref[...] = (x[:, :c] * _sigmoid(x[:, c:])).astype(o_ref.dtype)


def _pick_tile_rows(rows, row_bytes, sub):
    """Row-tile from a VMEM byte budget (2 in + 1 out, double-buffered ~ 6x)."""
    t = _BLOCK_BYTES_TARGET // max(row_bytes, 1)
    t = max(sub, (t // sub) * sub)
    t = min(t, 4096)
    if t >= rows:
        if rows >= 2 * sub:
            # Split in two: keeps software pipelining + both v7x TensorCores busy.
            half = -(-rows // 2)
            t = ((half + sub - 1) // sub) * sub
        else:
            t = rows  # full extent (satisfies tiling rule via "equal full dim")
    return t


def _glu_last_dim(x, c, sub, itemsize):
    """GLU over the last axis of x (shape [..., 2C])."""
    lead = x.shape[:-1]
    two_c = 2 * c
    rows = math.prod(lead)
    x2 = x.reshape(rows, two_c)

    tile_rows = _pick_tile_rows(rows, c * itemsize, sub)
    grid = (pl.cdiv(rows, tile_rows),)

    cost = pl.CostEstimate(flops=2 * rows * c,
                           transcendentals=rows * c,
                           bytes_accessed=3 * rows * c * itemsize)
    cparams = pltpu.CompilerParams(dimension_semantics=("parallel",),
                                   vmem_limit_bytes=_VMEM_LIMIT_BYTES)

    if c % 128 == 0:
        # Lane-aligned halves: pass the same array twice, select half via the
        # lane-block index. No in-kernel slice, unmasked stores.
        out2 = pl.pallas_call(
            _glu_split_kernel,
            out_shape=jax.ShapeDtypeStruct((rows, c), x.dtype),
            grid_spec=pltpu.PrefetchScalarGridSpec(
                num_scalar_prefetch=0,
                grid=grid,
                in_specs=[pl.BlockSpec((tile_rows, c), lambda i: (i, 0)),
                          pl.BlockSpec((tile_rows, c), lambda i: (i, 1))],
                out_specs=pl.BlockSpec((tile_rows, c), lambda i: (i, 0)),
            ),
            compiler_params=cparams,
            cost_estimate=cost,
        )(x2, x2)
    else:
        # Small / unaligned C: keep full 2C on lanes, slice inside the kernel.
        out2 = pl.pallas_call(
            _glu_fused_kernel,
            out_shape=jax.ShapeDtypeStruct((rows, c), x.dtype),
            grid_spec=pltpu.PrefetchScalarGridSpec(
                num_scalar_prefetch=0,
                grid=grid,
                in_specs=[pl.BlockSpec((tile_rows, two_c), lambda i: (i, 0))],
                out_specs=pl.BlockSpec((tile_rows, c), lambda i: (i, 0)),
            ),
            compiler_params=cparams,
            cost_estimate=cost,
        )(x2)
    return out2.reshape(lead + (c,))


def _glu_mid_dim(x, dim, c, itemsize):
    """GLU over a non-last axis, transpose-free: split along sublane blocks."""
    shape = x.shape
    outer = math.prod(shape[:dim])
    inner = math.prod(shape[dim + 1:])
    two_c = 2 * c
    x3 = x.reshape(outer, two_c, inner)   # free (contiguous merges)

    per_outer_bytes = c * inner * itemsize
    if per_outer_bytes <= _BLOCK_BYTES_TARGET:
        tile_inner = inner
        tile_outer = max(1, _BLOCK_BYTES_TARGET // per_outer_bytes)
        if tile_outer >= outer:
            tile_outer = -(-outer // 2) if outer >= 2 else 1
    else:
        tile_outer = 1
        tile_inner = (_BLOCK_BYTES_TARGET // (c * itemsize)) // 128 * 128
        tile_inner = max(128, tile_inner)
        tile_inner = min(tile_inner, inner)

    grid = (pl.cdiv(outer, tile_outer), pl.cdiv(inner, tile_inner))

    n = outer * c * inner
    cost = pl.CostEstimate(flops=2 * n, transcendentals=n,
                           bytes_accessed=3 * n * itemsize)
    cparams = pltpu.CompilerParams(dimension_semantics=("parallel", "parallel"),
                                   vmem_limit_bytes=_VMEM_LIMIT_BYTES)

    out3 = pl.pallas_call(
        _glu_split_kernel,
        out_shape=jax.ShapeDtypeStruct((outer, c, inner), x.dtype),
        grid_spec=pltpu.PrefetchScalarGridSpec(
            num_scalar_prefetch=0,
            grid=grid,
            in_specs=[
                pl.BlockSpec((tile_outer, c, tile_inner), lambda o, j: (o, 0, j)),
                pl.BlockSpec((tile_outer, c, tile_inner), lambda o, j: (o, 1, j)),
            ],
            out_specs=pl.BlockSpec((tile_outer, c, tile_inner),
                                   lambda o, j: (o, 0, j)),
        ),
        compiler_params=cparams,
        cost_estimate=cost,
    )(x3, x3)
    return out3.reshape(shape[:dim] + (c,) + shape[dim + 1:])


def glu_pallas(x, dim):
    """GLU: split x into (out, gate) along `dim`, return out * sigmoid(gate)."""
    ndim = x.ndim
    dim = dim % ndim
    two_c = x.shape[dim]
    assert two_c % 2 == 0, "GLU split axis must be even"
    c = two_c // 2
    itemsize = jnp.dtype(x.dtype).itemsize
    sub = max(8, 32 // itemsize)  # min sublane tile: 8 f32 / 16 bf16 / 32 int8

    if dim == ndim - 1:
        return _glu_last_dim(x, c, sub, itemsize)

    if c % 8 == 0:
        # Transpose-free path: split along the sublane axis of a (outer,2C,inner)
        # view, true innermost axis stays on lanes.
        return _glu_mid_dim(x, dim, c, itemsize)

    # Rare fallback (C not sublane-divisible): physically move split axis last.
    # TODO(synk): costs two extra HBM passes; only hit for tiny, odd C.
    perm = tuple(i for i in range(ndim) if i != dim) + (dim,)
    inv_perm = tuple(perm.index(i) for i in range(ndim))
    xt = jnp.transpose(x, perm)
    yt = _glu_last_dim(xt, c, sub, itemsize)
    return jnp.transpose(yt, inv_perm)


def glu_reference(x, dim):
    out, gate = jnp.split(x, 2, axis=dim)
    return out * jax.nn.sigmoid(gate)


if __name__ == "__main__":
    key = jax.random.PRNGKey(0)
    cases = [
        ((2, 8, 32), -1),    # conformer-style (B, T, 2H): fused small-C path
        ((2, 8, 256), -1),   # C=128 aligned: lane-aligned two-ref path
        ((2, 16, 128), 1),   # split on middle axis, transpose-free sublane split
        ((2, 6, 4, 16), 1),  # C=3 not sublane-divisible: transpose fallback
    ]
    keys = jax.random.split(key, len(cases))
    for k, (shape, dim) in zip(keys, cases):
        x = jax.random.normal(k, shape, dtype=jnp.float32)
        y = glu_pallas(x, dim)
        jax.block_until_ready(y)
        y_ref = glu_reference(x, dim)
        assert y.shape == y_ref.shape, (shape, dim, y.shape, y_ref.shape)
        assert jnp.allclose(y, y_ref, atol=1e-5, rtol=1e-5), (shape, dim)
    print("KERNEL_OK")
</pallas_src>

<mosaic_0001>
module attributes {stable_mosaic.version = 11 : i64} {
  func.func @_glu_fused_kernel(%arg0: i32, %arg1: memref<8x32xf32, #tpu.memory_space<vmem>>, %arg2: memref<8x16xf32, #tpu.memory_space<vmem>>) attributes {dimension_semantics = [#tpu.dimension_semantics<parallel>], iteration_bounds = array<i64: 2>, scalar_prefetch = 0 : i64, scratch_operands = 0 : i64, tpu.core_type = #tpu.core_type<tc>, window_params = [{transform_indices = @transform_0, window_bounds = array<i64: 8, 32>}, {transform_indices = @transform_1, window_bounds = array<i64: 8, 16>}]} {
    %c0 = arith.constant 0 : index
    %c0_0 = arith.constant 0 : index
    %0 = vector.load %arg1[%c0, %c0_0] : memref<8x32xf32, #tpu.memory_space<vmem>>, vector<8x32xf32>
    %1 = vector.extract_strided_slice %0 {offsets = [0, 0], sizes = [8, 16], strides = [1, 1]} : vector<8x32xf32> to vector<8x16xf32>
    %2 = vector.extract_strided_slice %0 {offsets = [0, 16], sizes = [8, 16], strides = [1, 1]} : vector<8x32xf32> to vector<8x16xf32>
    %cst = arith.constant 5.000000e-01 : f32
    %3 = vector.broadcast %cst : f32 to vector<8x16xf32>
    %4 = arith.mulf %2, %3 : vector<8x16xf32>
    %5 = math.tanh %4 : vector<8x16xf32>
    %cst_1 = arith.constant 1.000000e+00 : f32
    %6 = vector.broadcast %cst_1 : f32 to vector<8x16xf32>
    %7 = arith.addf %5, %6 : vector<8x16xf32>
    %cst_2 = arith.constant 5.000000e-01 : f32
    %8 = vector.broadcast %cst_2 : f32 to vector<8x16xf32>
    %9 = arith.mulf %8, %7 : vector<8x16xf32>
    %10 = arith.mulf %1, %9 : vector<8x16xf32>
    %c0_3 = arith.constant 0 : index
    %c0_4 = arith.constant 0 : index
    %11 = vector.load %arg2[%c0_3, %c0_4] : memref<8x16xf32, #tpu.memory_space<vmem>>, vector<8x16xf32>
    tpu.vector_store %arg2[%c0_3, %c0_4], %10 {strides = array<i32>} : memref<8x16xf32, #tpu.memory_space<vmem>>, vector<8x16xf32>,
    return
  }
  func.func @transform_0(%arg0: i32) -> (i32, i32) {
    %c0_i32 = arith.constant 0 : i32
    %c0_i32_0 = arith.constant 0 : i32
    return %arg0, %c0_i32 : i32, i32
  }
  func.func @transform_1(%arg0: i32) -> (i32, i32) {
    %c0_i32 = arith.constant 0 : i32
    %c0_i32_0 = arith.constant 0 : i32
    return %arg0, %c0_i32 : i32, i32
  }
}

</mosaic_0001>

<llo_original>
// kernel: tpu_custom_call.1
$region0: #{tpu_custom_call.1}
  #allocation0 [shape = 'u32[]', space=smem, size = 0x4, offset = 0x4, fixed_abs, tag = 'smem constant byte address 0x4 - core index']
  #allocation1 [shape = 'u32[144,128]{1,0:T(1,128)}', space=vmem, size = 0x12000, scoped, tag = 'internal scratch']
  %s0 = inlined_call_operand.hbm [shape: f32[16,32], index: 0, kind: input, shape index: {}]
  %s1 = inlined_call_operand.hbm [shape: f32[16,16], index: 1, kind: output, shape index: {}]
  %s2 = sld [smem:[#allocation0]]
  $region41: #{tpu_custom_call.1} parent=0
    _
  %s4 = ssub.s32 1, %s2
  %s5 = scalar_select 0, %s4, %s2
  $region1: #{tpu_custom_call.1} parent=0
    #allocation2 [shape = 'u8[8192]{0}', space=vmem, size = 0x2000, scoped, tag = 'input window, operand 0']
    #allocation3 [shape = 's32[2]{0}', space=sflag, size = 0x8, scoped, tag = 'scoped memory for tpu_custom_call.1']
    #allocation4 [shape = 's32[2]{0}', space=sflag, size = 0x8, scoped, tag = 'scoped memory for tpu_custom_call.1']
    #allocation5 [shape = 'u8[8192]{0}', space=vmem, size = 0x2000, scoped, tag = 'output window, operand 0']
    %6 = vsyncpa [#allocation3], 0
    %s7 = scalar_lea.sflag [#allocation3], 1
    %8 = vsyncpa %s7, 0
    %9 = vsyncpa [#allocation4], 0
    %s10 = scalar_lea.sflag [#allocation4], 1
    %11 = vsyncpa %s10, 0
    loop: start=0, step=1, limit=4
    $region2: #{tpu_custom_call.1} parent=1 // loop_pre_header
      _
    $region3: #{tpu_custom_call.1} parent=1 // loop_header
      %s13 = sphi 0, %s17
      %p14 = scmp.ge.s32.totalorder %s13, 4
      %s23 = sphi 0, %s25
      %s26 = sphi 0, %s23
      %s27 = sphi 0, %s26
      %s43 = sphi 0, %s27
      %s49 = sphi 0, %s51
      %s52 = sphi 0, %s49
      %s53 = sphi 0, %s52
      %s69 = sphi 0, %s53
    $region4: #{tpu_custom_call.1} parent=1 // loop_header_branch
      %16 = sbr.rel (%p14) target = $region8
    $region5: #{tpu_custom_call.1} parent=1 // loop_body
      %s18 = ssub.s32 %s13, 1
      %s19 = ssub.s32 %s13, 2
      %s20 = sadd.s32 %s13, 1
      %s21 = ssub.s32 %s13, %s20
      %p22 = scmp.eq.s32.totalorder %s21, 0
      %s24 = sadd.s32 %s23, 1
      %s25 = scalar_select %p22, %s23, %s24
      %p28 = pneg %p22
      %p29 = scmp.eq.s32.totalorder %s13, 1
      %p30 = por %p28, %p29
      %p31 = scmp.ne.s32.totalorder %s23, %s26
      %p32 = scmp.eq.s32.totalorder %s13, 0
      %p33 = por %p31, %p32
      %p34 = scmp.ne.s32.totalorder %s23, %s26
      %p35 = scmp.eq.s32.totalorder %s18, 1
      %p36 = por %p34, %p35
      %p37 = scmp.ne.s32.totalorder %s26, %s27
      %p38 = scmp.eq.s32.totalorder %s18, 0
      %p39 = por %p37, %p38
      %p40 = scmp.ne.s32.totalorder %s26, %s27
      %p41 = scmp.eq.s32.totalorder %s19, 1
      %p42 = por %p40, %p41
      %p44 = scmp.ne.s32.totalorder %s27, %s43
      %p45 = scmp.eq.s32.totalorder %s19, 0
      %p46 = por %p44, %p45
      %s47 = ssub.s32 %s13, %s20
      %p48 = scmp.eq.s32.totalorder %s47, 0
      %s50 = sadd.s32 %s49, 1
      %s51 = scalar_select %p48, %s49, %s50
      %p54 = pneg %p48
      %p55 = scmp.eq.s32.totalorder %s13, 1
      %p56 = por %p54, %p55
      %p57 = scmp.ne.s32.totalorder %s49, %s52
      %p58 = scmp.eq.s32.totalorder %s13, 0
      %p59 = por %p57, %p58
      %p60 = scmp.ne.s32.totalorder %s49, %s52
      %p61 = scmp.eq.s32.totalorder %s18, 1
      %p62 = por %p60, %p61
      %p63 = scmp.ne.s32.totalorder %s52, %s53
      %p64 = scmp.eq.s32.totalorder %s18, 0
      %p65 = por %p63, %p64
      %p66 = scmp.ne.s32.totalorder %s52, %s53
      %p67 = scmp.eq.s32.totalorder %s19, 1
      %p68 = por %p66, %p67
      %p70 = scmp.ne.s32.totalorder %s53, %s69
      %p71 = scmp.eq.s32.totalorder %s19, 0
      %p72 = por %p70, %p71
      %p73 = scmp.le.s32.totalorder 1, %s13
      %p74 = scmp.lt.s32.totalorder %s13, 3
      %p75 = pnand %p73, %p74
      %p76 = pneg %p75
      // Predicated region
      $region9: #{tpu_custom_call.1} parent=5 // pred_check
        _
      $region10: #{tpu_custom_call.1} parent=5 // pred_check_branch
        %78 = sbr.rel (%p75) target = $region12
      $region11: #{tpu_custom_call.1} parent=5 // pred_region
        %s79 = ssub.s32 %s13, 1
      $region12: #{tpu_custom_call.1} parent=5 // pred_fallthru
        _
      %p80 = scmp.lt.s32.totalorder %s13, 2
      // Predicated region
      $region13: #{tpu_custom_call.1} parent=5 // pred_check
        %p81 = pneg %p80
      $region14: #{tpu_custom_call.1} parent=5 // pred_check_branch
        %83 = sbr.rel (%p81) target = $region16
      $region15: #{tpu_custom_call.1} parent=5 // pred_region
        // Predicated region
        $region17: #{tpu_custom_call.1} parent=15 // pred_check
          %p84 = pneg %p33
        $region18: #{tpu_custom_call.1} parent=15 // pred_check_branch
          %86 = sbr.rel (%p84) target = $region20
        $region19: #{tpu_custom_call.1} parent=15 // pred_region
          %s87 = sand.u32 %s23, 1
          %s88 = scalar_lea.sflag [#allocation3], %s87
          %s89 = sand.u32 %s23, 1
          %s90 = smul.addr %s89, 8
          %s91 = scalar_lea.vmem [#allocation2], %s90
          %s93 = ssub.s32 128, 128
          %94 = vsyncadd %s88, %s93
          %s95 = smul.addr %s13, 128
          %s96 = scalar_lea.hbm %s0, %s95
          %s98 = sshll.u32 %s91, 4
          %s99 = int_to_ptr.vmem [resolvable:$true] %s98
          %101 = dma.hbm_to_vmem [thread:$0]  %s96, 128, %s99, %s88
        $region20: #{tpu_custom_call.1} parent=15 // pred_fallthru
          _
      $region16: #{tpu_custom_call.1} parent=5 // pred_fallthru
        _
      %p102 = scmp.le.s32.totalorder 1, %s13
      %p103 = scmp.lt.s32.totalorder %s13, 3
      %p104 = pnand %p102, %p103
      %p105 = pneg %p104
      // Predicated region
      $region21: #{tpu_custom_call.1} parent=5 // pred_check
        _
      $region22: #{tpu_custom_call.1} parent=5 // pred_check_branch
        %107 = sbr.rel (%p104) target = $region24
      $region23: #{tpu_custom_call.1} parent=5 // pred_region
        %s108 = ssub.s32 %s13, 1
        %s109 = sand.u32 %s26, 1
        %s110 = scalar_lea.sflag [#allocation3], %s109
        %s111 = sand.u32 %s26, 1
        %s112 = smul.addr %s111, 8
        %s113 = scalar_lea.vmem [#allocation2], %s112
        // Predicated region
        $region25: #{tpu_custom_call.1} parent=23 // pred_check
          %p114 = pneg %p39
        $region26: #{tpu_custom_call.1} parent=23 // pred_check_branch
          %116 = sbr.rel (%p114) target = $region28
        $region27: #{tpu_custom_call.1} parent=23 // pred_region
          %117 = dma.done %s110, 128
        $region28: #{tpu_custom_call.1} parent=23 // pred_fallthru
          _
        %s118 = sand.u32 %s26, 1
        %s119 = scalar_lea.sflag [#allocation3], %s118
        %s120 = sand.u32 %s26, 1
        %s121 = smul.addr %s120, 8
        %s122 = scalar_lea.vmem [#allocation2], %s121
        %p123 = pneg %p39
        %p124 = pneg %p36
        %p125 = pneg %p65
        %p126 = pneg %p62
        %s127 = sand.u32 %s52, 1
        %s128 = scalar_lea.sflag [#allocation4], %s127
        %s129 = sand.u32 %s52, 1
        %s130 = smul.addr %s129, 8
        %s131 = scalar_lea.vmem [#allocation5], %s130
        %v132 = vld [vmem:[%s113] sm:$0xff]
        %v133 = vmul.f32 %v132, 0.5
        %v134 = vtanh.pop %v133
        %v135 = vadd.f32 %v134, 1.0
        %v136 = vmul.f32 %v135, 0.5
        %138 = vrot.lane.b32.xlu0 %v136, 112
        %v139 = vpop.permute.xlu0 %138
        %v141 = vmul.f32 %v132, %v139
        %vm142 = vcmask 130048
        %143 = vst.msk [vmem:[%s131] sm:$0xff] %vm142, %v141
        %s144 = sand.u32 %s52, 1
        %s145 = scalar_lea.sflag [#allocation4], %s144
        %s146 = sand.u32 %s52, 1
        %s147 = smul.addr %s146, 8
        %s148 = scalar_lea.vmem [#allocation5], %s147
        // Predicated region
        $region29: #{tpu_custom_call.1} parent=23 // pred_check
          %p149 = pneg %p62
        $region30: #{tpu_custom_call.1} parent=23 // pred_check_branch
          %151 = sbr.rel (%p149) target = $region32
        $region31: #{tpu_custom_call.1} parent=23 // pred_region
          %s153 = ssub.s32 128, 128
          %154 = vsyncadd %s145, %s153
          %s155 = smul.addr %s18, 128
          %s156 = scalar_lea.hbm %s1, %s155
          %s158 = sshll.u32 %s148, 4
          %s159 = int_to_ptr.vmem [resolvable:$true] %s158
          %161 = dma.vmem_to_hbm [thread:$0]  %s159, 128, %s156, %s145
        $region32: #{tpu_custom_call.1} parent=23 // pred_fallthru
          _
      $region24: #{tpu_custom_call.1} parent=5 // pred_fallthru
        _
      %p162 = scmp.le.s32.totalorder 2, %s13
      // Predicated region
      $region33: #{tpu_custom_call.1} parent=5 // pred_check
        %p163 = pneg %p162
      $region34: #{tpu_custom_call.1} parent=5 // pred_check_branch
        %165 = sbr.rel (%p163) target = $region36
      $region35: #{tpu_custom_call.1} parent=5 // pred_region
        %s166 = ssub.s32 %s13, 2
        // Predicated region
        $region37: #{tpu_custom_call.1} parent=35 // pred_check
          %p167 = pneg %p68
        $region38: #{tpu_custom_call.1} parent=35 // pred_check_branch
          %169 = sbr.rel (%p167) target = $region40
        $region39: #{tpu_custom_call.1} parent=35 // pred_region
          %s170 = sand.u32 %s53, 1
          %s171 = scalar_lea.sflag [#allocation4], %s170
          %s172 = sand.u32 %s53, 1
          %s173 = smul.addr %s172, 8
          %s174 = scalar_lea.vmem [#allocation5], %s173
          %175 = dma.done %s171, 128
        $region40: #{tpu_custom_call.1} parent=35 // pred_fallthru
          _
      $region36: #{tpu_custom_call.1} parent=5 // pred_fallthru
        _
    $region6: #{tpu_custom_call.1} parent=1 // loop_footer
      %s17 = sadd.s32 1, %s13
    $region7: #{tpu_custom_call.1} parent=1 // loop_footer_branch
      %12 = sbr.rel target = $region3
    $region8: #{tpu_custom_call.1} parent=1 // loop_exit
      _
    %176 = vsyncpa [#allocation3], 1
    %s177 = scalar_lea.sflag [#allocation3], 1
    %178 = vsyncpa %s177, 1
    %179 = vsyncpa [#allocation4], 1
    %s180 = scalar_lea.sflag [#allocation4], 1
    %181 = vsyncpa %s180, 1

</llo_original>
